<compile_context>
chip_gen: v6e
topology: v6e:2x2x1
jax: 0.10.0
libtpu: 0.0.40
codegen_flags: <defaults>
</compile_context>

<pallas_src>
import numpy as np
import jax
import jax.numpy as jnp
from jax.experimental import pallas as pl
from jax.experimental.pallas import tpu as pltpu

_LANES = 128


def _fourier_basis_np(harmonics: int, size: int) -> np.ndarray:
    """torch.linspace(0, 2*pi, steps=size) + interleaved sin/cos rows -> (2H, size)."""
    t = np.linspace(0.0, 2.0 * np.pi, num=size, dtype=np.float64)
    rows = []
    for i in range(1, harmonics + 1):
        rows.append(np.sin(i * t))
        rows.append(np.cos(i * t))
    return np.stack(rows, axis=0).astype(np.float32)


def make_fused_basis(harmonics: int, backcast_size: int, forecast_size: int) -> jnp.ndarray:
    """Block-diagonal fused basis (4H, Wp), Wp = ceil((Tf+Tb)/128)*128.

    Built once at init (the torch bases are constants, requires_grad=False)
    and reused across calls.  theta @ fused = [forecast | backcast | zero-pad].
    """
    fb = _fourier_basis_np(harmonics, forecast_size)   # (2H, Tf)
    bb = _fourier_basis_np(harmonics, backcast_size)   # (2H, Tb)
    two_h = 2 * harmonics
    w = forecast_size + backcast_size
    wp = ((w + _LANES - 1) // _LANES) * _LANES
    fused = np.zeros((2 * two_h, wp), dtype=np.float32)
    fused[:two_h, :forecast_size] = fb
    fused[two_h:, forecast_size:forecast_size + backcast_size] = bb
    return jnp.asarray(fused)


def _fused_kernel(theta_ref, basis_ref, out_ref):
    # theta_ref: (TB, 4H), basis_ref: (4H, Wp), out_ref: (TB, Wp)
    # Single MXU matmul, f32 accumulation, one lane-dense output store.
    out_ref[...] = jnp.dot(
        theta_ref[...], basis_ref[...], preferred_element_type=jnp.float32
    )


def seasonality_basis_forward(theta, fused_basis, backcast_size, forecast_size,
                              *, block_b=512):
    """Pallas SeasonalityBasis.forward.

    theta:       (B, 4H) float32
    fused_basis: (4H, Wp) float32 from make_fused_basis
    returns (backcast (B, backcast_size), forecast (B, forecast_size))
    """
    b, p = theta.shape
    wp = fused_basis.shape[1]
    out_shape = jax.ShapeDtypeStruct((b, wp), jnp.float32)

    if b <= block_b:
        # Tiny/medium batch: gridless call with full-array VMEM blocks — no
        # pipeline machinery, no double-buffering of the once-read constant.
        fused_out = pl.pallas_call(
            _fused_kernel,
            out_shape=out_shape,
            in_specs=[
                pl.BlockSpec(memory_space=pltpu.MemorySpace.VMEM),
                pl.BlockSpec(memory_space=pltpu.MemorySpace.VMEM),
            ],
            out_specs=pl.BlockSpec(memory_space=pltpu.MemorySpace.VMEM),
        )(theta, fused_basis)
    else:
        # Large batch: tile over B (block_b multiple of 8), basis passed as a
        # full untiled block (constant block index => DMA'd once), batch axis
        # marked "parallel" for megacore / dual-TC sharding.
        tb = block_b
        fused_out = pl.pallas_call(
            _fused_kernel,
            out_shape=out_shape,
            grid=(pl.cdiv(b, tb),),
            in_specs=[
                pl.BlockSpec((tb, p), lambda i: (i, 0)),
                pl.BlockSpec(fused_basis.shape, lambda i: (0, 0)),
            ],
            out_specs=pl.BlockSpec((tb, wp), lambda i: (i, 0)),
            compiler_params=pltpu.CompilerParams(
                dimension_semantics=("parallel",)
            ),
        )(theta, fused_basis)

    forecast = fused_out[:, :forecast_size]
    backcast = fused_out[:, forecast_size:forecast_size + backcast_size]
    return backcast, forecast


if __name__ == "__main__":
    # Small, module-consistent shapes.
    harmonics = 4
    backcast_size = 16
    forecast_size = 8
    batch = 8

    fused_basis = make_fused_basis(harmonics, backcast_size, forecast_size)

    key = jax.random.PRNGKey(0)
    theta = jax.random.normal(key, (batch, 4 * harmonics), dtype=jnp.float32)

    backcast, forecast = seasonality_basis_forward(
        theta, fused_basis, backcast_size, forecast_size
    )
    jax.block_until_ready((backcast, forecast))

    # Reference check against plain-JAX einsum on the original (un-fused) bases.
    bb_ref = jnp.asarray(_fourier_basis_np(harmonics, backcast_size))
    fb_ref = jnp.asarray(_fourier_basis_np(harmonics, forecast_size))
    cut = 2 * harmonics
    back_ref = jnp.einsum("bp,pt->bt", theta[:, cut:], bb_ref)
    fore_ref = jnp.einsum("bp,pt->bt", theta[:, :cut], fb_ref)
    assert backcast.shape == (batch, backcast_size)
    assert forecast.shape == (batch, forecast_size)
    assert np.allclose(np.asarray(backcast), np.asarray(back_ref), atol=1e-5)
    assert np.allclose(np.asarray(forecast), np.asarray(fore_ref), atol=1e-5)

    # Exercise the batch-tiled ("parallel" grid) path as well, including a
    # batch that is not a multiple of the block size (masked last block).
    big_batch = 1536 + 40
    theta_big = jax.random.normal(
        jax.random.PRNGKey(1), (big_batch, 4 * harmonics), dtype=jnp.float32
    )
    back_big, fore_big = seasonality_basis_forward(
        theta_big, fused_basis, backcast_size, forecast_size, block_b=512
    )
    jax.block_until_ready((back_big, fore_big))
    back_big_ref = jnp.einsum("bp,pt->bt", theta_big[:, cut:], bb_ref)
    fore_big_ref = jnp.einsum("bp,pt->bt", theta_big[:, :cut], fb_ref)
    assert np.allclose(np.asarray(back_big), np.asarray(back_big_ref), atol=1e-5)
    assert np.allclose(np.asarray(fore_big), np.asarray(fore_big_ref), atol=1e-5)

    print("KERNEL_OK")
</pallas_src>

<mosaic_0001>
module attributes {stable_mosaic.version = 11 : i64} {
  func.func @_fused_kernel(%arg0: memref<8x16xf32, #tpu.memory_space<vmem>>, %arg1: memref<16x128xf32, #tpu.memory_space<vmem>>, %arg2: memref<8x128xf32, #tpu.memory_space<vmem>>) attributes {dimension_semantics = [], scalar_prefetch = 0 : i64, scratch_operands = 0 : i64, tpu.core_type = #tpu.core_type<tc>} {
    %c0 = arith.constant 0 : index
    %c0_0 = arith.constant 0 : index
    %0 = vector.load %arg0[%c0, %c0_0] : memref<8x16xf32, #tpu.memory_space<vmem>>, vector<8x16xf32>
    %c0_1 = arith.constant 0 : index
    %c0_2 = arith.constant 0 : index
    %1 = vector.load %arg1[%c0_1, %c0_2] : memref<16x128xf32, #tpu.memory_space<vmem>>, vector<16x128xf32>
    %cst = arith.constant dense<0.000000e+00> : vector<8x128xf32>
    %2 = tpu.matmul %0, %1, %cst {dimension_numbers = #tpu.dot_dimension_numbers<[1], [0], [0], [1], [0, 0, 1, 1], [], []>} : vector<8x16xf32>, vector<16x128xf32>, vector<8x128xf32> -> vector<8x128xf32>
    %c0_3 = arith.constant 0 : index
    %c0_4 = arith.constant 0 : index
    %3 = vector.load %arg2[%c0_3, %c0_4] : memref<8x128xf32, #tpu.memory_space<vmem>>, vector<8x128xf32>
    tpu.vector_store %arg2[%c0_3, %c0_4], %2 {strides = array<i32>} : memref<8x128xf32, #tpu.memory_space<vmem>>, vector<8x128xf32>,
    return
  }
}

</mosaic_0001>

<llo_original>
// kernel: tpu_custom_call.1
$region0: #{tpu_custom_call.1}
  #allocation0 [shape = 'u32[]', space=smem, size = 0x4, offset = 0x4, fixed_abs, tag = 'smem constant byte address 0x4 - core index']
  #allocation1 [shape = 'u32[144,128]{1,0:T(1,128)}', space=vmem, size = 0x12000, scoped, tag = 'internal scratch']
  %s0 = inlined_call_operand.hbm [shape: f32[8,16], index: 0, kind: input, shape index: {}]
  %s1 = inlined_call_operand.hbm [shape: f32[16,128], index: 1, kind: input, shape index: {}]
  %s2 = inlined_call_operand.hbm [shape: f32[8,128], index: 2, kind: output, shape index: {}]
  %s3 = sld [smem:[#allocation0]]
  $region26: #{tpu_custom_call.1} parent=0
    _
  %s5 = ssub.s32 1, %s3
  %s6 = scalar_select 0, %s5, %s3
  $region1: #{tpu_custom_call.1} parent=0
    #allocation2 [shape = 'u8[4096]{0}', space=vmem, size = 0x1000, scoped, tag = 'input window, operand 0, single buffered']
    #allocation3 [shape = 's32[1]{0}', space=sflag, size = 0x4, scoped, tag = 'scoped memory for tpu_custom_call.1']
    #allocation4 [shape = 's32[1]{0}', space=sflag, size = 0x4, scoped, tag = 'scoped memory for tpu_custom_call.1']
    #allocation5 [shape = 'u8[8192]{0}', space=vmem, size = 0x2000, scoped, tag = 'input window, operand 1, single buffered']
    #allocation6 [shape = 's32[1]{0}', space=sflag, size = 0x4, scoped, tag = 'scoped memory for tpu_custom_call.1']
    #allocation7 [shape = 'u8[4096]{0}', space=vmem, size = 0x1000, scoped, tag = 'output window, operand 0, single buffered']
    %7 = vsyncpa [#allocation3], 0
    %8 = vsyncpa [#allocation6], 0
    %9 = vsyncpa [#allocation4], 0
    // Predicated region
    $region2: #{tpu_custom_call.1} parent=1 // pred_check
      _
    $region3: #{tpu_custom_call.1} parent=1 // pred_check_branch
      %11 = sbr.rel (0) target = $region5
    $region4: #{tpu_custom_call.1} parent=1 // pred_region
      %s13 = ssub.s32 128, 128
      %14 = vsyncadd [#allocation3], %s13
      %s16 = sshll.u32 [#allocation2], 4
      %s17 = int_to_ptr.vmem [resolvable:$true] %s16
      %19 = dma.hbm_to_vmem [thread:$0]  %s0, 128, %s17, [#allocation3]
    $region5: #{tpu_custom_call.1} parent=1 // pred_fallthru
      _
    // Predicated region
    $region6: #{tpu_custom_call.1} parent=1 // pred_check
      _
    $region7: #{tpu_custom_call.1} parent=1 // pred_check_branch
      %21 = sbr.rel (0) target = $region9
    $region8: #{tpu_custom_call.1} parent=1 // pred_region
      %s23 = ssub.s32 256, 256
      %24 = vsyncadd [#allocation6], %s23
      %s25 = sshll.u32 [#allocation5], 4
      %s26 = int_to_ptr.vmem [resolvable:$true] %s25
      %31 = dma.hbm_to_vmem [thread:$0]  %s1, 256, %s26, [#allocation6], 128, 128, 8
    $region9: #{tpu_custom_call.1} parent=1 // pred_fallthru
      _
    // Predicated region
    $region10: #{tpu_custom_call.1} parent=1 // pred_check
      _
    $region11: #{tpu_custom_call.1} parent=1 // pred_check_branch
      %33 = sbr.rel (0) target = $region13
    $region12: #{tpu_custom_call.1} parent=1 // pred_region
      %34 = dma.done [#allocation3], 128
    $region13: #{tpu_custom_call.1} parent=1 // pred_fallthru
      _
    // Predicated region
    $region14: #{tpu_custom_call.1} parent=1 // pred_check
      _
    $region15: #{tpu_custom_call.1} parent=1 // pred_check_branch
      %36 = sbr.rel (0) target = $region17
    $region16: #{tpu_custom_call.1} parent=1 // pred_region
      %37 = dma.done [#allocation6], 256
    $region17: #{tpu_custom_call.1} parent=1 // pred_fallthru
      _
    %v38 = vld [vmem:[#allocation2] sm:$0xff]
    %v39 = vld [vmem:[#allocation5] sm:$0xff]
    %v40 = vld [vmem:[#allocation5 + $0x8] sm:$0xff]
    %vm41 = vcmask 130048
    %v43 = vsel %vm41, %v38, 0
    %45 = vmatprep.subr.mxu0 0.0
    %46 = vmatpush1.msra.mxu0 0.0
    %47 = vmatprep.subr.mxu0 0.0
    %48 = vmatpush1.msra.mxu0 0.0
    %49 = vmatprep.subr.mxu0 0.0
    %50 = vmatpush1.msra.mxu0 0.0
    %51 = vmatprep.subr.mxu0 0.0
    %52 = vmatpush1.msra.mxu0 0.0
    %53 = vmatprep.subr.mxu0 0.0
    %54 = vmatpush1.msra.mxu0 0.0
    %55 = vmatprep.subr.mxu0 0.0
    %56 = vmatpush1.msra.mxu0 0.0
    %57 = vmatprep.subr.mxu0 0.0
    %58 = vmatpush1.msra.mxu0 0.0
    %59 = vmatprep.subr.mxu0 0.0
    %60 = vmatpush1.msra.mxu0 0.0
    %61 = vmatprep.subr.mxu0 0.0
    %62 = vmatpush1.msra.mxu0 0.0
    %63 = vmatprep.subr.mxu0 0.0
    %64 = vmatpush1.msra.mxu0 0.0
    %65 = vmatprep.subr.mxu0 0.0
    %66 = vmatpush1.msra.mxu0 0.0
    %67 = vmatprep.subr.mxu0 0.0
    %68 = vmatpush1.msra.mxu0 0.0
    %69 = vmatprep.subr.mxu0 0.0
    %70 = vmatpush1.msra.mxu0 0.0
    %71 = vmatprep.subr.mxu0 0.0
    %72 = vmatpush1.msra.mxu0 0.0
    %73 = vmatprep.subr.mxu0 0.0
    %74 = vmatpush1.msra.mxu0 %v40
    %75 = vmatprep.subr.mxu0 0.0
    %76 = vmatpush1.msra.mxu0 %v39
    %77 = vmatprep.subr.mxu0 0.0
    %78 = vmatpush2.msra.mxu0 0.0
    %79 = vmatprep.subr.mxu0 0.0
    %80 = vmatpush2.msra.mxu0 0.0
    %81 = vmatprep.subr.mxu0 0.0
    %82 = vmatpush2.msra.mxu0 0.0
    %83 = vmatprep.subr.mxu0 0.0
    %84 = vmatpush2.msra.mxu0 0.0
    %85 = vmatprep.subr.mxu0 0.0
    %86 = vmatpush2.msra.mxu0 0.0
    %87 = vmatprep.subr.mxu0 0.0
    %88 = vmatpush2.msra.mxu0 0.0
    %89 = vmatprep.subr.mxu0 0.0
    %90 = vmatpush2.msra.mxu0 0.0
    %91 = vmatprep.subr.mxu0 0.0
    %92 = vmatpush2.msra.mxu0 0.0
    %93 = vmatprep.subr.mxu0 0.0
    %94 = vmatpush2.msra.mxu0 0.0
    %95 = vmatprep.subr.mxu0 0.0
    %96 = vmatpush2.msra.mxu0 0.0
    %97 = vmatprep.subr.mxu0 0.0
    %98 = vmatpush2.msra.mxu0 0.0
    %99 = vmatprep.subr.mxu0 0.0
    %100 = vmatpush2.msra.mxu0 0.0
    %101 = vmatprep.subr.mxu0 0.0
    %102 = vmatpush2.msra.mxu0 0.0
    %103 = vmatprep.subr.mxu0 0.0
    %104 = vmatpush2.msra.mxu0 0.0
    %105 = vmatprep.subr.mxu0 0.0
    %106 = vmatpush2.msra.mxu0 0.0
    %107 = vmatprep.subr.mxu0 0.0
    %108 = vmatpush2.msra.mxu0 0.0
    %109 = vmatprep.mubr.f32.mxu0 0.0
    %110 = vmatmul.mubr.f32.gmra.mxu0 %v43
    %v111 = vpop.f32.mrf.mxu0
    %v112 = vadd.f32 0.0, %v111
    %v113 = vpop.f32.mrf.mxu0
    %114 = vdwg.mxu0
    %115 = vst [vmem:[#allocation7] sm:$0xff] %v112
    // Predicated region
    $region18: #{tpu_custom_call.1} parent=1 // pred_check
      _
    $region19: #{tpu_custom_call.1} parent=1 // pred_check_branch
      %117 = sbr.rel (0) target = $region21
    $region20: #{tpu_custom_call.1} parent=1 // pred_region
      %s119 = ssub.s32 128, 128
      %120 = vsyncadd [#allocation4], %s119
      %s122 = sshll.u32 [#allocation7], 4
      %s123 = int_to_ptr.vmem [resolvable:$true] %s122
      %125 = dma.vmem_to_hbm [thread:$0]  %s123, 128, %s2, [#allocation4]
    $region21: #{tpu_custom_call.1} parent=1 // pred_fallthru
      _
    // Predicated region
    $region22: #{tpu_custom_call.1} parent=1 // pred_check
      _
    $region23: #{tpu_custom_call.1} parent=1 // pred_check_branch
      %127 = sbr.rel (0) target = $region25
    $region24: #{tpu_custom_call.1} parent=1 // pred_region
      %128 = dma.done [#allocation4], 128
    $region25: #{tpu_custom_call.1} parent=1 // pred_fallthru
      _
    %129 = vsyncpa [#allocation3], 1
    %130 = vsyncpa [#allocation6], 1
    %131 = vsyncpa [#allocation4], 1

</llo_original>
